<compile_context>
chip_gen: v5e
topology: v5e:2x2
jax: 0.10.0
libtpu: 0.0.40
codegen_flags: <defaults>
</compile_context>

<pallas_src>
import functools

import jax
import jax.numpy as jnp
import numpy as np
from jax.experimental import pallas as pl
from jax.experimental.pallas import tpu as pltpu


def _copy_kernel(x_ref, o_ref):
    # Pure tiled copy: x_ref and o_ref are identically-shaped lane-dense
    # (rows, cols) VMEM tiles.
    o_ref[...] = x_ref[...]


def _pick_tile(extent: int, candidates) -> int:
    """Largest candidate that evenly divides `extent`, else the full extent."""
    for c in candidates:
        if c <= extent and extent % c == 0:
            return c
    return extent


@functools.partial(jax.jit, static_argnames=())
def ravel_forward(x: jax.Array) -> jax.Array:
    """Pallas equivalent of `ravel.forward`: flatten all non-batch dims."""
    B = x.shape[0]
    flat = int(np.prod(x.shape[1:])) if x.ndim > 1 else 1

    # Free, metadata-only flatten in the wrapper (matches torch .view on a
    # contiguous tensor: row-major C, H, W flatten).
    x2d = jnp.reshape(x, (B, flat))

    # Lane-dense tiling of the 2D view.
    #  * cols: multiple of 128 when possible (unmasked full-width stores),
    #    otherwise the full extent (BlockSpec allows block dim == array dim).
    #  * rows: multiple of 8 when possible, otherwise the full extent.
    tn = _pick_tile(flat, (2048, 1024, 512, 256, 128))
    tm = _pick_tile(B, (256, 128, 64, 32, 16, 8))

    grid = (B // tm, flat // tn)
    itemsize = jnp.dtype(x.dtype).itemsize

    out = pl.pallas_call(
        _copy_kernel,
        out_shape=jax.ShapeDtypeStruct((B, flat), x.dtype),
        grid=grid,
        in_specs=[
            pl.BlockSpec((tm, tn), lambda i, j: (i, j)),
        ],
        out_specs=pl.BlockSpec((tm, tn), lambda i, j: (i, j)),
        compiler_params=pltpu.CompilerParams(
            # Both axes independent -> shard across the 2 TensorCores on v7x.
            dimension_semantics=("parallel", "parallel"),
        ),
        cost_estimate=pl.CostEstimate(
            flops=0,
            transcendentals=0,
            bytes_accessed=2 * B * flat * itemsize,
        ),
    )(x2d)
    return out


if __name__ == "__main__":
    key = jax.random.PRNGKey(0)
    # Small image-like conv input: (B, C, H, W).
    x = jax.random.normal(key, (2, 4, 16, 16), dtype=jnp.float32)

    out = ravel_forward(x)
    jax.block_until_ready(out)

    # Correctness check against the pure-JAX reference of torch's x.view(B, -1).
    ref = jnp.reshape(x, (x.shape[0], -1))
    assert out.shape == (2, 4 * 16 * 16), out.shape
    assert out.dtype == x.dtype
    np.testing.assert_array_equal(np.asarray(out), np.asarray(ref))

    print("KERNEL_OK")
</pallas_src>

<mosaic_0001>
module attributes {stable_mosaic.version = 11 : i64} {
  func.func @_copy_kernel(%arg0: i32, %arg1: i32, %arg2: memref<2x1024xf32, #tpu.memory_space<vmem>>, %arg3: memref<2x1024xf32, #tpu.memory_space<vmem>>) attributes {dimension_semantics = [#tpu.dimension_semantics<parallel>, #tpu.dimension_semantics<parallel>], iteration_bounds = array<i64: 1, 1>, scalar_prefetch = 0 : i64, scratch_operands = 0 : i64, tpu.core_type = #tpu.core_type<tc>, window_params = [{transform_indices = @transform_0, window_bounds = array<i64: 2, 1024>}, {transform_indices = @transform_1, window_bounds = array<i64: 2, 1024>}]} {
    %c0 = arith.constant 0 : index
    %c0_0 = arith.constant 0 : index
    %0 = vector.load %arg2[%c0, %c0_0] : memref<2x1024xf32, #tpu.memory_space<vmem>>, vector<2x1024xf32>
    %c0_1 = arith.constant 0 : index
    %c0_2 = arith.constant 0 : index
    %1 = vector.load %arg3[%c0_1, %c0_2] : memref<2x1024xf32, #tpu.memory_space<vmem>>, vector<2x1024xf32>
    tpu.vector_store %arg3[%c0_1, %c0_2], %0 {strides = array<i32>} : memref<2x1024xf32, #tpu.memory_space<vmem>>, vector<2x1024xf32>,
    return
  }
  func.func @transform_0(%arg0: i32, %arg1: i32) -> (i32, i32) {
    %c0_i32 = arith.constant 0 : i32
    return %arg0, %arg1 : i32, i32
  }
  func.func @transform_1(%arg0: i32, %arg1: i32) -> (i32, i32) {
    %c0_i32 = arith.constant 0 : i32
    return %arg0, %arg1 : i32, i32
  }
}

</mosaic_0001>

<llo_original>
// kernel: ravel_forward.1
$region0: #{ravel_forward.1}
  #allocation0 [shape = 'u32[]', space=smem, size = 0x4, offset = 0x4, fixed_abs, tag = 'smem constant byte address 0x4 - core index']
  #allocation1 [shape = 'u32[72,128]{1,0:T(1,128)}', space=vmem, size = 0x9000, scoped, tag = 'internal scratch']
  %s0 = inlined_call_operand.vmem [shape: f32[2,1024], index: 0, kind: input, shape index: {}]
  %s1 = inlined_call_operand.hbm [shape: f32[2,1024], index: 1, kind: output, shape index: {}]
  %s2 = sld [smem:[#allocation0]]
  $region14: #{ravel_forward.1} parent=0
    _
  %s4 = ssub.s32 1, %s2
  %s5 = scalar_select 0, %s4, %s2
  $region1: #{ravel_forward.1} parent=0
    #allocation2 [shape = 'u8[8192]{0}', space=vmem, size = 0x2000, scoped, tag = 'output window, operand 0, single buffered']
    #allocation3 [shape = 's32[1]{0}', space=sflag, size = 0x4, scoped, tag = 'scoped memory for ravel_forward.1']
    %6 = vsyncpa [#allocation3], 0
    // Predicated region
    $region2: #{ravel_forward.1} parent=1 // pred_check
      _
    $region3: #{ravel_forward.1} parent=1 // pred_check_branch
      %8 = sbr.rel (0) target = $region5
    $region4: #{ravel_forward.1} parent=1 // pred_region
      _
    $region5: #{ravel_forward.1} parent=1 // pred_fallthru
      _
    %v9 = vld [vmem:[%s0] sm:$0xff]
    %v10 = vld [vmem:[%s0 + $0x8] sm:$0xff]
    %11 = vst [vmem:[#allocation2] sm:$0xff] %v9
    %12 = vst [vmem:[#allocation2 + $0x8] sm:$0xff] %v10
    // Predicated region
    $region6: #{ravel_forward.1} parent=1 // pred_check
      _
    $region7: #{ravel_forward.1} parent=1 // pred_check_branch
      %14 = sbr.rel (0) target = $region9
    $region8: #{ravel_forward.1} parent=1 // pred_region
      %16 = vsyncadd [#allocation3], 0
      %s18 = sshll.u32 [#allocation2], 4
      %s19 = int_to_ptr.vmem [resolvable:$true] %s18
      %s20 = sshll.u32 %s1, 4
      %s21 = int_to_ptr.hbm [resolvable:$true] %s20
      %23 = dma.vmem_to_hbm [thread:$0]  %s19, 256, %s21, [#allocation3]
    $region9: #{ravel_forward.1} parent=1 // pred_fallthru
      _
    // Predicated region
    $region10: #{ravel_forward.1} parent=1 // pred_check
      _
    $region11: #{ravel_forward.1} parent=1 // pred_check_branch
      %25 = sbr.rel (0) target = $region13
    $region12: #{ravel_forward.1} parent=1 // pred_region
      %27 = dma.done [#allocation3], 256
    $region13: #{ravel_forward.1} parent=1 // pred_fallthru
      _
    %28 = vsyncpa [#allocation3], 1

</llo_original>
